<compile_context>
chip_gen: v5e
topology: v5e:2x2
jax: 0.10.0
libtpu: 0.0.40
codegen_flags: <defaults>
</compile_context>

<pallas_src>
import jax
import jax.numpy as jnp
from jax.experimental import pallas as pl
from jax.experimental.pallas import tpu as pltpu


def _binary_token_dropout_kernel(x_ref, keep_ref, o_ref):
    """x_ref/o_ref: (TILE_N, H) VMEM tiles; keep_ref: (TILE_N, 1) 0/1 mask tile."""
    # (TILE_N, 1) broadcasts across the lane (H) dimension — pure VPU work.
    o_ref[...] = x_ref[...] * keep_ref[...]


def _pick_tile_n(n_rows: int, hidden: int, itemsize: int,
                 vmem_budget_bytes: int = 24 * 1024 * 1024) -> int:
    """Largest row tile (multiple of 8) s.t. 4 double-buffered (tile_n, H) tiles
    (x + out, 2 buffers each) fit the VMEM budget; the (tile_n, 1) mask is noise."""
    per_row = max(1, hidden * itemsize)
    rows = vmem_budget_bytes // (4 * per_row)
    rows = min(int(rows), 4096)
    rows = max(8, (rows // 8) * 8)
    if rows >= n_rows:
        return n_rows          # single full block — always a legal block shape
    return rows                # multiple of 8; partial last block handled by Pallas


def binary_token_dropout(x: jax.Array, p: float, seed: int, training: bool = True) -> jax.Array:
    """Pallas implementation of BinaryTokenDropout.forward (no 1/q rescale, as in the ref)."""
    if (not training) or (p == 0.0):
        return x

    B, T, H = x.shape
    N = B * T
    q = 1.0 - p

    # One Bernoulli(q) draw per token; independent of the tiling / core sharding.
    key = jax.random.PRNGKey(seed)
    keep = jax.random.bernoulli(key, q, (N, 1)).astype(x.dtype)

    x2 = x.reshape(N, H)
    itemsize = jnp.dtype(x.dtype).itemsize
    tile_n = _pick_tile_n(N, H, itemsize)
    grid = (pl.cdiv(N, tile_n),)

    out2 = pl.pallas_call(
        _binary_token_dropout_kernel,
        out_shape=jax.ShapeDtypeStruct((N, H), x.dtype),
        grid=grid,
        in_specs=[
            pl.BlockSpec((tile_n, H), lambda i: (i, 0)),   # activations tile
            pl.BlockSpec((tile_n, 1), lambda i: (i, 0)),   # per-token keep mask tile
        ],
        out_specs=pl.BlockSpec((tile_n, H), lambda i: (i, 0)),
        compiler_params=pltpu.CompilerParams(
            dimension_semantics=("parallel",),             # shard rows across TCs on v7x
            vmem_limit_bytes=32 * 1024 * 1024,             # fits v5e..v7x scoped budgets
        ),
        cost_estimate=pl.CostEstimate(
            flops=N * H,
            transcendentals=0,
            bytes_accessed=(2 * N * H + N) * itemsize,
        ),
    )(x2, keep)

    return out2.reshape(B, T, H)


if __name__ == "__main__":
    key = jax.random.PRNGKey(0)
    B, T, H = 2, 8, 32
    p = 0.5

    x = jax.random.normal(key, (B, T, H), dtype=jnp.float32)

    out = binary_token_dropout(x, p=p, seed=0, training=True)
    out = jax.block_until_ready(out)
    assert out.shape == (B, T, H) and out.dtype == x.dtype

    # Structural check: every token row is either exactly the input row or all zeros.
    row_is_orig = jnp.all(out == x, axis=-1)
    row_is_zero = jnp.all(out == 0.0, axis=-1)
    assert bool(jnp.all(row_is_orig | row_is_zero)), "token rows must be kept or fully zeroed"

    # The kernel must reproduce exactly input * keep[..., None] for the same draw.
    keep_ref = jax.random.bernoulli(jax.random.PRNGKey(0), 1.0 - p, (B * T, 1)).astype(x.dtype)
    expected = (x.reshape(B * T, H) * keep_ref).reshape(B, T, H)
    assert bool(jnp.all(out == expected)), "kernel must match input * mask[..., None]"

    # Eval mode / p == 0 pass-through.
    assert bool(jnp.all(binary_token_dropout(x, p=p, seed=0, training=False) == x))
    assert bool(jnp.all(binary_token_dropout(x, p=0.0, seed=0, training=True) == x))

    print("KERNEL_OK")
</pallas_src>

<mosaic_0001>
module attributes {stable_mosaic.version = 11 : i64} {
  func.func @_binary_token_dropout_kernel(%arg0: i32, %arg1: memref<16x32xf32, #tpu.memory_space<vmem>>, %arg2: memref<16x1xf32, #tpu.memory_space<vmem>>, %arg3: memref<16x32xf32, #tpu.memory_space<vmem>>) attributes {dimension_semantics = [#tpu.dimension_semantics<parallel>], iteration_bounds = array<i64: 1>, scalar_prefetch = 0 : i64, scratch_operands = 0 : i64, tpu.core_type = #tpu.core_type<tc>, window_params = [{transform_indices = @transform_0, window_bounds = array<i64: 16, 32>}, {transform_indices = @transform_1, window_bounds = array<i64: 16, 1>}, {transform_indices = @transform_2, window_bounds = array<i64: 16, 32>}]} {
    %c0 = arith.constant 0 : index
    %c0_0 = arith.constant 0 : index
    %0 = vector.load %arg1[%c0, %c0_0] : memref<16x32xf32, #tpu.memory_space<vmem>>, vector<16x32xf32>
    %c0_1 = arith.constant 0 : index
    %c0_2 = arith.constant 0 : index
    %1 = vector.load %arg2[%c0_1, %c0_2] : memref<16x1xf32, #tpu.memory_space<vmem>>, vector<16x1xf32>
    %2 = vector.broadcast %1 : vector<16x1xf32> to vector<16x32xf32>
    %3 = arith.mulf %0, %2 : vector<16x32xf32>
    %c0_3 = arith.constant 0 : index
    %c0_4 = arith.constant 0 : index
    %4 = vector.load %arg3[%c0_3, %c0_4] : memref<16x32xf32, #tpu.memory_space<vmem>>, vector<16x32xf32>
    tpu.vector_store %arg3[%c0_3, %c0_4], %3 {strides = array<i32>} : memref<16x32xf32, #tpu.memory_space<vmem>>, vector<16x32xf32>,
    return
  }
  func.func @transform_0(%arg0: i32) -> (i32, i32) {
    %c0_i32 = arith.constant 0 : i32
    %c0_i32_0 = arith.constant 0 : i32
    return %arg0, %c0_i32 : i32, i32
  }
  func.func @transform_1(%arg0: i32) -> (i32, i32) {
    %c0_i32 = arith.constant 0 : i32
    %c0_i32_0 = arith.constant 0 : i32
    return %arg0, %c0_i32 : i32, i32
  }
  func.func @transform_2(%arg0: i32) -> (i32, i32) {
    %c0_i32 = arith.constant 0 : i32
    %c0_i32_0 = arith.constant 0 : i32
    return %arg0, %c0_i32 : i32, i32
  }
}

</mosaic_0001>

<llo_original>
// kernel: tpu_custom_call.1
$region0: #{tpu_custom_call.1}
  #allocation0 [shape = 'u32[]', space=smem, size = 0x4, offset = 0x4, fixed_abs, tag = 'smem constant byte address 0x4 - core index']
  #allocation1 [shape = 'u32[72,128]{1,0:T(1,128)}', space=vmem, size = 0x9000, scoped, tag = 'internal scratch']
  %s0 = inlined_call_operand.vmem [shape: f32[16,32], index: 0, kind: input, shape index: {}]
  %s1 = inlined_call_operand.vmem [shape: f32[16,1], index: 1, kind: input, shape index: {}]
  %s2 = inlined_call_operand.hbm [shape: f32[16,32], index: 2, kind: output, shape index: {}]
  %s3 = sld [smem:[#allocation0]]
  $region18: #{tpu_custom_call.1} parent=0
    _
  %s5 = ssub.s32 1, %s3
  %s6 = scalar_select 0, %s5, %s3
  $region1: #{tpu_custom_call.1} parent=0
    #allocation2 [shape = 'u8[8192]{0}', space=vmem, size = 0x2000, scoped, tag = 'output window, operand 0, single buffered']
    #allocation3 [shape = 's32[1]{0}', space=sflag, size = 0x4, scoped, tag = 'scoped memory for tpu_custom_call.1']
    %7 = vsyncpa [#allocation3], 0
    // Predicated region
    $region2: #{tpu_custom_call.1} parent=1 // pred_check
      _
    $region3: #{tpu_custom_call.1} parent=1 // pred_check_branch
      %9 = sbr.rel (0) target = $region5
    $region4: #{tpu_custom_call.1} parent=1 // pred_region
      _
    $region5: #{tpu_custom_call.1} parent=1 // pred_fallthru
      _
    // Predicated region
    $region6: #{tpu_custom_call.1} parent=1 // pred_check
      _
    $region7: #{tpu_custom_call.1} parent=1 // pred_check_branch
      %11 = sbr.rel (0) target = $region9
    $region8: #{tpu_custom_call.1} parent=1 // pred_region
      _
    $region9: #{tpu_custom_call.1} parent=1 // pred_fallthru
      _
    %v12 = vld [vmem:[%s0] sm:$0xff]
    %v13 = vld [vmem:[%s0 + $0x8] sm:$0xff]
    %v14 = vld [vmem:[%s1] sm:$0xff]
    %v15 = vld [vmem:[%s1 + $0x8] sm:$0xff]
    %17 = vset.pattern.permute.xlu0 0
    %18 = vperm.xlu0 %17, %v14
    %v19 = vpop.permute.xlu0 %18
    %22 = vset.pattern.permute.xlu0 0
    %23 = vperm.xlu0 %22, %v15
    %v24 = vpop.permute.xlu0 %23
    %v26 = vmul.f32 %v12, %v19
    %v27 = vmul.f32 %v13, %v24
    %vm28 = vcmask 261120
    %29 = vst.msk [vmem:[#allocation2] sm:$0xff] %vm28, %v26
    %30 = vst.msk [vmem:[#allocation2 + $0x8] sm:$0xff] %vm28, %v27
    // Predicated region
    $region10: #{tpu_custom_call.1} parent=1 // pred_check
      _
    $region11: #{tpu_custom_call.1} parent=1 // pred_check_branch
      %32 = sbr.rel (0) target = $region13
    $region12: #{tpu_custom_call.1} parent=1 // pred_region
      %34 = vsyncadd [#allocation3], 0
      %s35 = sshll.u32 [#allocation2], 4
      %s36 = int_to_ptr.vmem [resolvable:$true] %s35
      %s37 = sshll.u32 %s2, 4
      %s38 = int_to_ptr.hbm [resolvable:$true] %s37
      %43 = dma.vmem_to_hbm [thread:$0]  %s36, 256, %s38, [#allocation3], 128, 128, 8
    $region13: #{tpu_custom_call.1} parent=1 // pred_fallthru
      _
    // Predicated region
    $region14: #{tpu_custom_call.1} parent=1 // pred_check
      _
    $region15: #{tpu_custom_call.1} parent=1 // pred_check_branch
      %45 = sbr.rel (0) target = $region17
    $region16: #{tpu_custom_call.1} parent=1 // pred_region
      %47 = dma.done [#allocation3], 256
    $region17: #{tpu_custom_call.1} parent=1 // pred_fallthru
      _
    %48 = vsyncpa [#allocation3], 1

</llo_original>
